<compile_context>
chip_gen: v6e
topology: v6e:2x2x1
jax: 0.10.0
libtpu: 0.0.40
codegen_flags: <defaults>
</compile_context>

<pallas_src>
import jax
import jax.numpy as jnp
from jax.experimental import pallas as pl
from jax.experimental.pallas import tpu as pltpu

TILE = 1024          # row tile (B*H*W rows); large to amortize pipeline overhead
COMPUTE_DTYPE = jnp.bfloat16


def _pick_tile(n, tile=TILE):
    """Use a big tile, but never (much) bigger than the problem itself."""
    return min(tile, ((n + 7) // 8) * 8)


def _leaky(y):
    # LeakyReLU(negative_slope=0.2) on f32 accumulators.
    return jnp.maximum(y, 0.2 * y)


# ----------------------------------------------------------------------------
# patch_feature_net: 4-layer (1x1 conv [+ folded BN] + LeakyReLU) MLP, 6 -> 128
# ----------------------------------------------------------------------------
def patch_kernel(x_ref, w1, b1, w2, b2, w3, b3, w4, b4, o_ref):
    h = x_ref[...]                                                     # bf16 (T, 6)
    h = _leaky(jnp.dot(h, w1[...], preferred_element_type=jnp.float32) + b1[...])
    h = _leaky(jnp.dot(h.astype(COMPUTE_DTYPE), w2[...],
                       preferred_element_type=jnp.float32) + b2[...])
    h = _leaky(jnp.dot(h.astype(COMPUTE_DTYPE), w3[...],
                       preferred_element_type=jnp.float32) + b3[...])
    out = jnp.dot(h.astype(COMPUTE_DTYPE), w4[...],
                  preferred_element_type=jnp.float32) + b4[...]
    o_ref[...] = out.astype(o_ref.dtype)


def run_patch_feature(x_rows, ws, bs):
    """x_rows: (N, 6) bf16 rows -> (N, 128) bf16 features."""
    n, c_in = x_rows.shape
    tile = _pick_tile(n)
    consts = []
    for w, b in zip(ws, bs):
        consts += [w, b]
    in_specs = [pl.BlockSpec((tile, c_in), lambda i: (i, 0))]
    in_specs += [pl.BlockSpec(p.shape, lambda i: (0, 0)) for p in consts]
    return pl.pallas_call(
        patch_kernel,
        out_shape=jax.ShapeDtypeStruct((n, 128), COMPUTE_DTYPE),
        grid=(pl.cdiv(n, tile),),
        in_specs=in_specs,
        out_specs=pl.BlockSpec((tile, 128), lambda i: (i, 0)),
        compiler_params=pltpu.CompilerParams(
            dimension_semantics=("parallel",)),
    )(x_rows, *consts)


# ----------------------------------------------------------------------------
# Fused dual attention head kernel:
#   attention_net + grad_attention_net, sharing one read of the
#   (pairs, dist, feat, pooled) features; first-layer matmul is split into
#   per-piece matmuls against weight slices (no 263-wide concat in HBM).
#   Output is a lane-dense (T, 128) tile: col 0 = attention, col 1 = grad-attn.
# ----------------------------------------------------------------------------
def dual_attn_kernel(pairs_ref, dist_ref, feat_ref, pool_ref,
                     aw1p, aw1d, aw1f, aw1g, ab1, aw2, ab2, aw3, ab3, aw4,
                     bw1p, bw1d, bw1f, bw1g, bb1, bw2, bb2, bw3, bb3, bw4,
                     b4_ref, o_ref):
    pairs = pairs_ref[...]                              # bf16 (T, 6)
    dist = dist_ref[...].astype(jnp.float32)            # f32  (T, 1)
    feat = feat_ref[...]                                # bf16 (T, 128)
    pool = pool_ref[...]                                # bf16 (T, 128)

    def head(w1p, w1d, w1f, w1g, b1, w2, b2, w3, b3, w4):
        # layer 1: split matmul over the un-concatenated feature pieces.
        y = jnp.dot(pairs, w1p[...], preferred_element_type=jnp.float32)
        y = y + jnp.dot(feat, w1f[...], preferred_element_type=jnp.float32)
        y = y + jnp.dot(pool, w1g[...], preferred_element_type=jnp.float32)
        y = y + dist * w1d[...].astype(jnp.float32)     # (T,1)*(1,256) broadcast
        h = _leaky(y + b1[...])
        h = _leaky(jnp.dot(h.astype(COMPUTE_DTYPE), w2[...],
                           preferred_element_type=jnp.float32) + b2[...])
        h = _leaky(jnp.dot(h.astype(COMPUTE_DTYPE), w3[...],
                           preferred_element_type=jnp.float32) + b3[...])
        # final 1x1 conv with the 1-wide weight padded to 128 lanes.
        return jnp.dot(h.astype(COMPUTE_DTYPE), w4[...],
                       preferred_element_type=jnp.float32)

    out = (head(aw1p, aw1d, aw1f, aw1g, ab1, aw2, ab2, aw3, ab3, aw4)
           + head(bw1p, bw1d, bw1f, bw1g, bb1, bw2, bb2, bw3, bb3, bw4)
           + b4_ref[...])
    o_ref[...] = out.astype(o_ref.dtype)


def run_dual_attention(pairs, dist, feat, pooled, head_a, head_b, b4_pad):
    """Rows: pairs (N,6) bf16, dist (N,1) f32, feat/pooled (N,128) bf16.
    Returns (N,128) f32; column 0 = attention logit, column 1 = grad-attn."""
    n = pairs.shape[0]
    tile = _pick_tile(n)
    consts = list(head_a) + list(head_b) + [b4_pad]
    in_specs = [
        pl.BlockSpec((tile, 6), lambda i: (i, 0)),
        pl.BlockSpec((tile, 1), lambda i: (i, 0)),
        pl.BlockSpec((tile, 128), lambda i: (i, 0)),
        pl.BlockSpec((tile, 128), lambda i: (i, 0)),
    ] + [pl.BlockSpec(p.shape, lambda i: (0, 0)) for p in consts]
    return pl.pallas_call(
        dual_attn_kernel,
        out_shape=jax.ShapeDtypeStruct((n, 128), jnp.float32),
        grid=(pl.cdiv(n, tile),),
        in_specs=in_specs,
        out_specs=pl.BlockSpec((tile, 128), lambda i: (i, 0)),
        compiler_params=pltpu.CompilerParams(
            dimension_semantics=("parallel",)),
    )(pairs, dist, feat, pooled, *consts)


# ----------------------------------------------------------------------------
# Deterministic parameter construction (matches module __init__ shapes) with
# eval-mode BatchNorm folded into the conv weight/bias.  Weights are bf16.
# ----------------------------------------------------------------------------
def make_folded_params(key, dims):
    """dims = [c_in, c1, c2, c3, c_out]; first 3 layers have BN, last is plain.
    Returns (weights[bf16], biases[f32]) per layer with BN folded in."""
    eps = 1e-5
    ws, bs = [], []
    keys = jax.random.split(key, 16)
    k = 0
    for li in range(4):
        cin, cout = dims[li], dims[li + 1]
        w = jax.random.normal(keys[k], (cin, cout), jnp.float32) * (cin ** -0.5)
        k += 1
        b = 0.01 * jax.random.normal(keys[k], (1, cout), jnp.float32)
        k += 1
        if li < 3:
            gamma = 1.0 + 0.05 * jax.random.normal(keys[k], (1, cout), jnp.float32)
            k += 1
            beta = 0.05 * jax.random.normal(keys[k], (1, cout), jnp.float32)
            k += 1
            run_mean = jnp.zeros((1, cout), jnp.float32)
            run_var = jnp.ones((1, cout), jnp.float32)
            scale = gamma / jnp.sqrt(run_var + eps)          # (1, cout)
            shift = beta - run_mean * scale
            # fold: (x@w + b) * scale + shift == x@(w*scale) + (b*scale + shift)
            w = w * scale
            b = b * scale + shift
        else:
            k += 2
        ws.append(w.astype(COMPUTE_DTYPE))
        bs.append(b)                                          # f32
    return ws, bs


def split_attention_head(ws, bs, col, out_width=128):
    """Split layer-1 weight into (pairs, dist, feat, pooled) slices and pad the
    1-wide final layer into `col` of an out_width-wide lane-dense weight."""
    w1, w2, w3, w4 = ws
    b1, b2, b3, b4 = bs
    w1p = w1[0:6]          # (6, 256)
    w1d = w1[6:7]          # (1, 256)
    w1f = w1[7:135]        # (128, 256)
    w1g = w1[135:263]      # (128, 256)
    w4_pad = jnp.zeros((w4.shape[0], out_width), w4.dtype).at[:, col].set(w4[:, 0])
    b4_pad = jnp.zeros((1, out_width), jnp.float32).at[0, col].set(b4[0, 0])
    head = [w1p, w1d, w1f, w1g, b1, w2, b2, w3, b3, w4_pad]
    return head, b4_pad


# ----------------------------------------------------------------------------
# UDF module (Pallas-backed sub-networks)
# ----------------------------------------------------------------------------
class UDFPallas:
    def __init__(self, key, K=10):
        self.K = K
        k_att, k_gatt, k_patch = jax.random.split(key, 3)
        c_att = 6 + 1 + 128 + 128  # 263

        self.patch_ws, self.patch_bs = make_folded_params(
            k_patch, [6, 64, 128, 128, 128])

        att_ws, att_bs = make_folded_params(k_att, [c_att, 256, 128, 32, 1])
        gatt_ws, gatt_bs = make_folded_params(k_gatt, [c_att, 256, 128, 32, 1])
        self.head_a, b4a = split_attention_head(att_ws, att_bs, col=0)
        self.head_b, b4b = split_attention_head(gatt_ws, gatt_bs, col=1)
        self.b4_pad = b4a + b4b   # combined padded final bias (1, 128) f32

    def patch_feature_net(self, rows6_bf16):           # (N, 6) -> (N, 128) bf16
        return run_patch_feature(rows6_bf16, self.patch_ws, self.patch_bs)

    def attention_heads(self, pairs, dist, feat, pooled):   # -> (N, 128) f32
        return run_dual_attention(pairs, dist, feat, pooled,
                                  self.head_a, self.head_b, self.b4_pad)

    def forward(self, input_pcd, query_points):
        """
        input_pcd:    (B, Np, 3)
        query_points: (B, Nq, 3)
        TODO(synk): reference forward is NotImplementedError; this composition
        is a representative driver (KNN gather + per-pair features + attention).
        """
        B, Np, _ = input_pcd.shape
        _, Nq, _ = query_points.shape
        K = self.K

        # --- glue: K nearest neighbors of each query (plain JAX, top_k) ---
        d2 = jnp.sum(
            (query_points[:, :, None, :] - input_pcd[:, None, :, :]) ** 2, -1)
        _, idx = jax.lax.top_k(-d2, K)                                 # (B, Nq, K)
        pcd_b = jnp.broadcast_to(input_pcd[:, None], (B, Nq, Np, 3))
        neigh = jnp.take_along_axis(pcd_b, idx[..., None], axis=2)     # (B, Nq, K, 3)
        q_b = jnp.broadcast_to(query_points[:, :, None, :], (B, Nq, K, 3))

        pairs = jnp.concatenate([q_b, neigh], axis=-1)                 # (B, Nq, K, 6)
        dist = jnp.linalg.norm(q_b - neigh, axis=-1, keepdims=True)    # (B, Nq, K, 1)

        N = B * Nq * K
        pairs_rows = pairs.reshape(N, 6).astype(COMPUTE_DTYPE)
        dist_rows = dist.reshape(N, 1)                                 # f32

        # --- Pallas: patch_feature_net (1x1 conv MLP) ---
        feat_rows = self.patch_feature_net(pairs_rows)                 # (N, 128) bf16
        feat = feat_rows.reshape(B, Nq, K, 128)
        pooled = jnp.max(feat, axis=2, keepdims=True)
        pooled_rows = jnp.broadcast_to(pooled, (B, Nq, K, 128)).reshape(N, 128)

        # --- Pallas: fused attention + grad-attention heads ---
        heads = self.attention_heads(pairs_rows, dist_rows, feat_rows, pooled_rows)
        att = heads[:, 0].reshape(B, Nq, K)
        gatt = heads[:, 1].reshape(B, Nq, K)

        w = jax.nn.softmax(att, axis=-1)
        udf = jnp.sum(w * dist[..., 0], axis=-1)                       # (B, Nq)
        return udf, att, gatt


# ----------------------------------------------------------------------------
if __name__ == "__main__":
    key = jax.random.PRNGKey(0)
    k_model, k_pcd, k_query = jax.random.split(key, 3)

    B, Np, Nq = 2, 16, 8
    input_pcd = jax.random.normal(k_pcd, (B, Np, 3), jnp.float32)
    query_points = jax.random.normal(k_query, (B, Nq, 3), jnp.float32)

    model = UDFPallas(k_model, K=10)
    udf, att, gatt = model.forward(input_pcd, query_points)
    jax.block_until_ready((udf, att, gatt))

    assert udf.shape == (B, Nq)
    assert att.shape == (B, Nq, model.K)
    assert gatt.shape == (B, Nq, model.K)
    assert bool(jnp.all(jnp.isfinite(udf)))
    print("KERNEL_OK")
</pallas_src>

<mosaic_0001>
module attributes {stable_mosaic.version = 11 : i64} {
  func.func @patch_kernel(%arg0: i32, %arg1: memref<160x6xbf16, #tpu.memory_space<vmem>>, %arg2: memref<6x64xbf16, #tpu.memory_space<vmem>>, %arg3: memref<1x64xf32, #tpu.memory_space<vmem>>, %arg4: memref<64x128xbf16, #tpu.memory_space<vmem>>, %arg5: memref<1x128xf32, #tpu.memory_space<vmem>>, %arg6: memref<128x128xbf16, #tpu.memory_space<vmem>>, %arg7: memref<1x128xf32, #tpu.memory_space<vmem>>, %arg8: memref<128x128xbf16, #tpu.memory_space<vmem>>, %arg9: memref<1x128xf32, #tpu.memory_space<vmem>>, %arg10: memref<160x128xbf16, #tpu.memory_space<vmem>>) attributes {dimension_semantics = [#tpu.dimension_semantics<parallel>], iteration_bounds = array<i64: 1>, scalar_prefetch = 0 : i64, scratch_operands = 0 : i64, tpu.core_type = #tpu.core_type<tc>, window_params = [{transform_indices = @transform_0, window_bounds = array<i64: 160, 6>}, {pipeline_mode = #tpu.pipeline_mode<synchronous>, transform_indices = @transform_1, window_bounds = array<i64: 6, 64>}, {pipeline_mode = #tpu.pipeline_mode<synchronous>, transform_indices = @transform_2, window_bounds = array<i64: 1, 64>}, {pipeline_mode = #tpu.pipeline_mode<synchronous>, transform_indices = @transform_3, window_bounds = array<i64: 64, 128>}, {pipeline_mode = #tpu.pipeline_mode<synchronous>, transform_indices = @transform_4, window_bounds = array<i64: 1, 128>}, {pipeline_mode = #tpu.pipeline_mode<synchronous>, transform_indices = @transform_5, window_bounds = array<i64: 128, 128>}, {pipeline_mode = #tpu.pipeline_mode<synchronous>, transform_indices = @transform_6, window_bounds = array<i64: 1, 128>}, {pipeline_mode = #tpu.pipeline_mode<synchronous>, transform_indices = @transform_7, window_bounds = array<i64: 128, 128>}, {pipeline_mode = #tpu.pipeline_mode<synchronous>, transform_indices = @transform_8, window_bounds = array<i64: 1, 128>}, {transform_indices = @transform_9, window_bounds = array<i64: 160, 128>}]} {
    %c0 = arith.constant 0 : index
    %c0_0 = arith.constant 0 : index
    %0 = vector.load %arg1[%c0, %c0_0] : memref<160x6xbf16, #tpu.memory_space<vmem>>, vector<160x6xbf16>
    %c0_1 = arith.constant 0 : index
    %c0_2 = arith.constant 0 : index
    %1 = vector.load %arg2[%c0_1, %c0_2] : memref<6x64xbf16, #tpu.memory_space<vmem>>, vector<6x64xbf16>
    %cst = arith.constant dense<0.000000e+00> : vector<160x64xf32>
    %2 = tpu.matmul %0, %1, %cst {dimension_numbers = #tpu.dot_dimension_numbers<[1], [0], [0], [1], [0, 0, 1, 1], [], []>} : vector<160x6xbf16>, vector<6x64xbf16>, vector<160x64xf32> -> vector<160x64xf32>
    %c0_3 = arith.constant 0 : index
    %c0_4 = arith.constant 0 : index
    %3 = vector.load %arg3[%c0_3, %c0_4] : memref<1x64xf32, #tpu.memory_space<vmem>>, vector<1x64xf32>
    %4 = vector.broadcast %3 : vector<1x64xf32> to vector<160x64xf32>
    %5 = arith.addf %2, %4 : vector<160x64xf32>
    %cst_5 = arith.constant 2.000000e-01 : f32
    %6 = vector.broadcast %cst_5 : f32 to vector<160x64xf32>
    %7 = arith.mulf %6, %5 : vector<160x64xf32>
    %8 = arith.maximumf %5, %7 : vector<160x64xf32>
    %9 = arith.truncf %8 : vector<160x64xf32> to vector<160x64xbf16>
    %c0_6 = arith.constant 0 : index
    %c0_7 = arith.constant 0 : index
    %10 = vector.load %arg4[%c0_6, %c0_7] : memref<64x128xbf16, #tpu.memory_space<vmem>>, vector<64x128xbf16>
    %cst_8 = arith.constant dense<0.000000e+00> : vector<160x128xf32>
    %11 = tpu.matmul %9, %10, %cst_8 {dimension_numbers = #tpu.dot_dimension_numbers<[1], [0], [0], [1], [0, 0, 1, 1], [], []>} : vector<160x64xbf16>, vector<64x128xbf16>, vector<160x128xf32> -> vector<160x128xf32>
    %c0_9 = arith.constant 0 : index
    %c0_10 = arith.constant 0 : index
    %12 = vector.load %arg5[%c0_9, %c0_10] : memref<1x128xf32, #tpu.memory_space<vmem>>, vector<1x128xf32>
    %13 = vector.broadcast %12 : vector<1x128xf32> to vector<160x128xf32>
    %14 = arith.addf %11, %13 : vector<160x128xf32>
    %cst_11 = arith.constant 2.000000e-01 : f32
    %15 = vector.broadcast %cst_11 : f32 to vector<160x128xf32>
    %16 = arith.mulf %15, %14 : vector<160x128xf32>
    %17 = arith.maximumf %14, %16 : vector<160x128xf32>
    %18 = arith.truncf %17 : vector<160x128xf32> to vector<160x128xbf16>
    %c0_12 = arith.constant 0 : index
    %c0_13 = arith.constant 0 : index
    %19 = vector.load %arg6[%c0_12, %c0_13] : memref<128x128xbf16, #tpu.memory_space<vmem>>, vector<128x128xbf16>
    %cst_14 = arith.constant dense<0.000000e+00> : vector<160x128xf32>
    %20 = tpu.matmul %18, %19, %cst_14 {dimension_numbers = #tpu.dot_dimension_numbers<[1], [0], [0], [1], [0, 0, 1, 1], [], []>} : vector<160x128xbf16>, vector<128x128xbf16>, vector<160x128xf32> -> vector<160x128xf32>
    %c0_15 = arith.constant 0 : index
    %c0_16 = arith.constant 0 : index
    %21 = vector.load %arg7[%c0_15, %c0_16] : memref<1x128xf32, #tpu.memory_space<vmem>>, vector<1x128xf32>
    %22 = vector.broadcast %21 : vector<1x128xf32> to vector<160x128xf32>
    %23 = arith.addf %20, %22 : vector<160x128xf32>
    %cst_17 = arith.constant 2.000000e-01 : f32
    %24 = vector.broadcast %cst_17 : f32 to vector<160x128xf32>
    %25 = arith.mulf %24, %23 : vector<160x128xf32>
    %26 = arith.maximumf %23, %25 : vector<160x128xf32>
    %27 = arith.truncf %26 : vector<160x128xf32> to vector<160x128xbf16>
    %c0_18 = arith.constant 0 : index
    %c0_19 = arith.constant 0 : index
    %28 = vector.load %arg8[%c0_18, %c0_19] : memref<128x128xbf16, #tpu.memory_space<vmem>>, vector<128x128xbf16>
    %cst_20 = arith.constant dense<0.000000e+00> : vector<160x128xf32>
    %29 = tpu.matmul %27, %28, %cst_20 {dimension_numbers = #tpu.dot_dimension_numbers<[1], [0], [0], [1], [0, 0, 1, 1], [], []>} : vector<160x128xbf16>, vector<128x128xbf16>, vector<160x128xf32> -> vector<160x128xf32>
    %c0_21 = arith.constant 0 : index
    %c0_22 = arith.constant 0 : index
    %30 = vector.load %arg9[%c0_21, %c0_22] : memref<1x128xf32, #tpu.memory_space<vmem>>, vector<1x128xf32>
    %31 = vector.broadcast %30 : vector<1x128xf32> to vector<160x128xf32>
    %32 = arith.addf %29, %31 : vector<160x128xf32>
    %33 = arith.truncf %32 : vector<160x128xf32> to vector<160x128xbf16>
    %c0_23 = arith.constant 0 : index
    %c0_24 = arith.constant 0 : index
    %34 = vector.load %arg10[%c0_23, %c0_24] : memref<160x128xbf16, #tpu.memory_space<vmem>>, vector<160x128xbf16>
    tpu.vector_store %arg10[%c0_23, %c0_24], %33 {strides = array<i32>} : memref<160x128xbf16, #tpu.memory_space<vmem>>, vector<160x128xbf16>,
    return
  }
  func.func @transform_0(%arg0: i32) -> (i32, i32) {
    %c0_i32 = arith.constant 0 : i32
    %c0_i32_0 = arith.constant 0 : i32
    return %arg0, %c0_i32 : i32, i32
  }
  func.func @transform_1(%arg0: i32) -> (i32, i32) {
    %c0_i32 = arith.constant 0 : i32
    %c0_i32_0 = arith.constant 0 : i32
    %c0_i32_1 = arith.constant 0 : i32
    return %c0_i32, %c0_i32_0 : i32, i32
  }
  func.func @transform_2(%arg0: i32) -> (i32, i32) {
    %c0_i32 = arith.constant 0 : i32
    %c0_i32_0 = arith.constant 0 : i32
    %c0_i32_1 = arith.constant 0 : i32
    return %c0_i32, %c0_i32_0 : i32, i32
  }
  func.func @transform_3(%arg0: i32) -> (i32, i32) {
    %c0_i32 = arith.constant 0 : i32
    %c0_i32_0 = arith.constant 0 : i32
    %c0_i32_1 = arith.constant 0 : i32
    return %c0_i32, %c0_i32_0 : i32, i32
  }
  func.func @transform_4(%arg0: i32) -> (i32, i32) {
    %c0_i32 = arith.constant 0 : i32
    %c0_i32_0 = arith.constant 0 : i32
    %c0_i32_1 = arith.constant 0 : i32
    return %c0_i32, %c0_i32_0 : i32, i32
  }
  func.func @transform_5(%arg0: i32) -> (i32, i32) {
    %c0_i32 = arith.constant 0 : i32
    %c0_i32_0 = arith.constant 0 : i32
    %c0_i32_1 = arith.constant 0 : i32
    return %c0_i32, %c0_i32_0 : i32, i32
  }
  func.func @transform_6(%arg0: i32) -> (i32, i32) {
    %c0_i32 = arith.constant 0 : i32
    %c0_i32_0 = arith.constant 0 : i32
    %c0_i32_1 = arith.constant 0 : i32
    return %c0_i32, %c0_i32_0 : i32, i32
  }
  func.func @transform_7(%arg0: i32) -> (i32, i32) {
    %c0_i32 = arith.constant 0 : i32
    %c0_i32_0 = arith.constant 0 : i32
    %c0_i32_1 = arith.constant 0 : i32
    return %c0_i32, %c0_i32_0 : i32, i32
  }
  func.func @transform_8(%arg0: i32) -> (i32, i32) {
    %c0_i32 = arith.constant 0 : i32
    %c0_i32_0 = arith.constant 0 : i32
    %c0_i32_1 = arith.constant 0 : i32
    return %c0_i32, %c0_i32_0 : i32, i32
  }
  func.func @transform_9(%arg0: i32) -> (i32, i32) {
    %c0_i32 = arith.constant 0 : i32
    %c0_i32_0 = arith.constant 0 : i32
    return %arg0, %c0_i32 : i32, i32
  }
}

</mosaic_0001>

<llo_original>
// kernel: tpu_custom_call.1
$region0: #{tpu_custom_call.1}
  #allocation0 [shape = 'u32[]', space=smem, size = 0x4, offset = 0x4, fixed_abs, tag = 'smem constant byte address 0x4 - core index']
  #allocation1 [shape = 'u32[144,128]{1,0:T(1,128)}', space=vmem, size = 0x12000, scoped, tag = 'internal scratch']
  %s0 = inlined_call_operand.vmem [shape: bf16[160,6], index: 0, kind: input, shape index: {}]
  %s1 = inlined_call_operand.hbm [shape: bf16[6,64], index: 1, kind: input, shape index: {}]
  %s2 = inlined_call_operand.vmem [shape: f32[1,64], index: 2, kind: input, shape index: {}]
  %s3 = inlined_call_operand.vmem [shape: bf16[64,128], index: 3, kind: input, shape index: {}]
  %s4 = inlined_call_operand.hbm [shape: f32[1,128], index: 4, kind: input, shape index: {}]
  %s5 = inlined_call_operand.vmem [shape: bf16[128,128], index: 5, kind: input, shape index: {}]
  %s6 = inlined_call_operand.vmem [shape: f32[1,128], index: 6, kind: input, shape index: {}]
  %s7 = inlined_call_operand.hbm [shape: bf16[128,128], index: 7, kind: input, shape index: {}]
  %s8 = inlined_call_operand.vmem [shape: f32[1,128], index: 8, kind: input, shape index: {}]
  %s9 = inlined_call_operand.hbm [shape: bf16[160,128], index: 9, kind: output, shape index: {}]
  %s10 = sld [smem:[#allocation0]]
  $region58: #{tpu_custom_call.1} parent=0
    _
  %s12 = ssub.s32 1, %s10
  %s13 = scalar_select 0, %s12, %s10
  $region1: #{tpu_custom_call.1} parent=0
    #allocation2 [shape = 'u8[2048]{0}', space=vmem, size = 0x800, scoped, tag = 'input window, operand 1, single buffered']
    #allocation3 [shape = 's32[1]{0}', space=sflag, size = 0x4, scoped, tag = 'scoped memory for tpu_custom_call.1']
    #allocation4 [shape = 's32[1]{0}', space=sflag, size = 0x4, scoped, tag = 'scoped memory for tpu_custom_call.1']
    #allocation5 [shape = 'u8[512]{0}', space=vmem, size = 0x400, scoped, tag = 'input window, operand 4, single buffered']
    #allocation6 [shape = 's32[1]{0}', space=sflag, size = 0x4, scoped, tag = 'scoped memory for tpu_custom_call.1']
    #allocation7 [shape = 'u8[32768]{0}', space=vmem, size = 0x8000, scoped, tag = 'input window, operand 7, single buffered']
    #allocation8 [shape = 'u8[40960]{0}', space=vmem, size = 0xa000, scoped, tag = 'output window, operand 0, single buffered']
    %14 = vsyncpa [#allocation3], 0
    %15 = vsyncpa [#allocation6], 0
    %16 = vsyncpa [#allocation4], 0
    // Predicated region
    $region2: #{tpu_custom_call.1} parent=1 // pred_check
      _
    $region3: #{tpu_custom_call.1} parent=1 // pred_check_branch
      %18 = sbr.rel (0) target = $region5
    $region4: #{tpu_custom_call.1} parent=1 // pred_region
      _
    $region5: #{tpu_custom_call.1} parent=1 // pred_fallthru
      _
    // Predicated region
    $region6: #{tpu_custom_call.1} parent=1 // pred_check
      _
    $region7: #{tpu_custom_call.1} parent=1 // pred_check_branch
      %20 = sbr.rel (0) target = $region9
    $region8: #{tpu_custom_call.1} parent=1 // pred_region
      %s22 = ssub.s32 64, 64
      %23 = vsyncadd [#allocation3], %s22
      %s25 = sshll.u32 [#allocation2], 4
      %s26 = int_to_ptr.vmem [resolvable:$true] %s25
      %28 = dma.hbm_to_vmem [thread:$0]  %s1, 64, %s26, [#allocation3]
    $region9: #{tpu_custom_call.1} parent=1 // pred_fallthru
      _
    // Predicated region
    $region10: #{tpu_custom_call.1} parent=1 // pred_check
      _
    $region11: #{tpu_custom_call.1} parent=1 // pred_check_branch
      %30 = sbr.rel (0) target = $region13
    $region12: #{tpu_custom_call.1} parent=1 // pred_region
      _
    $region13: #{tpu_custom_call.1} parent=1 // pred_fallthru
      _
    // Predicated region
    $region14: #{tpu_custom_call.1} parent=1 // pred_check
      _
    $region15: #{tpu_custom_call.1} parent=1 // pred_check_branch
      %32 = sbr.rel (0) target = $region17
    $region16: #{tpu_custom_call.1} parent=1 // pred_region
      _
    $region17: #{tpu_custom_call.1} parent=1 // pred_fallthru
      _
    // Predicated region
    $region18: #{tpu_custom_call.1} parent=1 // pred_check
      _
    $region19: #{tpu_custom_call.1} parent=1 // pred_check_branch
      %34 = sbr.rel (0) target = $region21
    $region20: #{tpu_custom_call.1} parent=1 // pred_region
      %s36 = ssub.s32 16, 16
      %37 = vsyncadd [#allocation6], %s36
      %s39 = sshll.u32 [#allocation5], 4
      %s40 = int_to_ptr.vmem [resolvable:$true] %s39
      %42 = dma.hbm_to_vmem [thread:$0]  %s4, 16, %s40, [#allocation6]
    $region21: #{tpu_custom_call.1} parent=1 // pred_fallthru
      _
    // Predicated region
    $region22: #{tpu_custom_call.1} parent=1 // pred_check
      _
    $region23: #{tpu_custom_call.1} parent=1 // pred_check_branch
      %44 = sbr.rel (0) target = $region25
    $region24: #{tpu_custom_call.1} parent=1 // pred_region
      _
    $region25: #{tpu_custom_call.1} parent=1 // pred_fallthru
      _
    // Predicated region
    $region26: #{tpu_custom_call.1} parent=1 // pred_check
      _
    $region27: #{tpu_custom_call.1} parent=1 // pred_check_branch
      %46 = sbr.rel (0) target = $region29
    $region28: #{tpu_custom_call.1} parent=1 // pred_region
      _
    $region29: #{tpu_custom_call.1} parent=1 // pred_fallthru
      _
    // Predicated region
    $region30: #{tpu_custom_call.1} parent=1 // pred_check
      _
    $region31: #{tpu_custom_call.1} parent=1 // pred_check_branch
      %48 = sbr.rel (0) target = $region33
    $region32: #{tpu_custom_call.1} parent=1 // pred_region
      %s50 = ssub.s32 1024, 1024
      %51 = vsyncadd [#allocation6], %s50
      %s52 = sshll.u32 [#allocation7], 4
      %s53 = int_to_ptr.vmem [resolvable:$true] %s52
      %58 = dma.hbm_to_vmem [thread:$0]  %s7, 1024, %s53, [#allocation6], 64, 64, 4
    $region33: #{tpu_custom_call.1} parent=1 // pred_fallthru
      _
    // Predicated region
    $region34: #{tpu_custom_call.1} parent=1 // pred_check
      _
    $region35: #{tpu_custom_call.1} parent=1 // pred_check_branch
      %60 = sbr.rel (0) target = $region37
    $region36: #{tpu_custom_call.1} parent=1 // pred_region
      _
    $region37: #{tpu_custom_call.1} parent=1 // pred_fallthru
      _
    // Predicated region
    $region38: #{tpu_custom_call.1} parent=1 // pred_check
      _
    $region39: #{tpu_custom_call.1} parent=1 // pred_check_branch
      %62 = sbr.rel (0) target = $region41
    $region40: #{tpu_custom_call.1} parent=1 // pred_region
      %63 = dma.done [#allocation3], 64
    $region41: #{tpu_custom_call.1} parent=1 // pred_fallthru
      _
    // Predicated region
    $region42: #{tpu_custom_call.1} parent=1 // pred_check
      _
    $region43: #{tpu_custom_call.1} parent=1 // pred_check_branch
      %65 = sbr.rel (0) target = $region45
    $region44: #{tpu_custom_call.1} parent=1 // pred_region
      %66 = dma.done [#allocation6], 16
    $region45: #{tpu_custom_call.1} parent=1 // pred_fallthru
      _
    // Predicated region
    $region46: #{tpu_custom_call.1} parent=1 // pred_check
      _
    $region47: #{tpu_custom_call.1} parent=1 // pred_check_branch
      %68 = sbr.rel (0) target = $region49
    $region48: #{tpu_custom_call.1} parent=1 // pred_region
      %69 = dma.done [#allocation6], 1024
    $region49: #{tpu_custom_call.1} parent=1 // pred_fallthru
      _
    %v71 = vld [vmem:[%s0] sm:$0xf]
    %v72 = vld [vmem:[%s0 + $0x4] sm:$0xf]
    %v73 = vld [vmem:[%s0 + $0x8] sm:$0xf]
    %v74 = vld [vmem:[%s0 + $0xc] sm:$0xf]
    %v75 = vld [vmem:[%s0 + $0x10] sm:$0xf]
    %v76 = vld [vmem:[%s0 + $0x14] sm:$0xf]
    %v77 = vld [vmem:[%s0 + $0x18] sm:$0xf]
    %v78 = vld [vmem:[%s0 + $0x1c] sm:$0xf]
    %v79 = vld [vmem:[%s0 + $0x20] sm:$0xf]
    %v80 = vld [vmem:[%s0 + $0x24] sm:$0xf]
    %v81 = vld [vmem:[%s0 + $0x28] sm:$0xf]
    %v82 = vld [vmem:[%s0 + $0x2c] sm:$0xf]
    %v83 = vld [vmem:[%s0 + $0x30] sm:$0xf]
    %v84 = vld [vmem:[%s0 + $0x34] sm:$0xf]
    %v85 = vld [vmem:[%s0 + $0x38] sm:$0xf]
    %v86 = vld [vmem:[%s0 + $0x3c] sm:$0xf]
    %v87 = vld [vmem:[%s0 + $0x40] sm:$0xf]
    %v88 = vld [vmem:[%s0 + $0x44] sm:$0xf]
    %v89 = vld [vmem:[%s0 + $0x48] sm:$0xf]
    %v90 = vld [vmem:[%s0 + $0x4c] sm:$0xf]
    %v91 = vld [vmem:[#allocation2] sm:$0x7]
    %v92 = vld [vmem:[%s2] sm:$0x1]
    %v94 = vlaneseq
    %v95 = vshrl.u32 %v94, 7
    %v96 = vsub.s32 0, %v95
    %v97 = vrot.slane %v92, %v96
    %v119 = vunpack.c.l.b16 %v71
    %v120 = vunpack.c.l.b16 %v72
    %v121 = vunpack.c.l.b16 %v73
    %v122 = vunpack.c.l.b16 %v74
    %v123 = vunpack.c.l.b16 %v75
    %v124 = vunpack.c.l.b16 %v76
    %v125 = vunpack.c.l.b16 %v77
    %v126 = vunpack.c.l.b16 %v78
    %v127 = vunpack.c.l.b16 %v79
    %v128 = vunpack.c.l.b16 %v80
    %v129 = vunpack.c.l.b16 %v81
    %v130 = vunpack.c.l.b16 %v82
    %v131 = vunpack.c.l.b16 %v83
    %v132 = vunpack.c.l.b16 %v84
    %v133 = vunpack.c.l.b16 %v85
    %v134 = vunpack.c.l.b16 %v86
    %v135 = vunpack.c.l.b16 %v87
    %v136 = vunpack.c.l.b16 %v88
    %v137 = vunpack.c.l.b16 %v89
    %v138 = vunpack.c.l.b16 %v90
    %v139 = vpack.c.b16 %v120, %v119
    %v140 = vpack.c.b16 %v122, %v121
    %v141 = vpack.c.b16 %v124, %v123
    %v142 = vpack.c.b16 %v126, %v125
    %v143 = vpack.c.b16 %v128, %v127
    %v144 = vpack.c.b16 %v130, %v129
    %v145 = vpack.c.b16 %v132, %v131
    %v146 = vpack.c.b16 %v134, %v133
    %v147 = vpack.c.b16 %v136, %v135
    %v148 = vpack.c.b16 %v138, %v137
    %vm149 = vcmask 48128
    %v151 = vsel %vm149, %v139, 0
    %v154 = vsel %vm149, %v140, 0
    %v157 = vsel %vm149, %v141, 0
    %v160 = vsel %vm149, %v142, 0
    %v163 = vsel %vm149, %v143, 0
    %v166 = vsel %vm149, %v144, 0
    %v169 = vsel %vm149, %v145, 0
    %v172 = vsel %vm149, %v146, 0
    %v175 = vsel %vm149, %v147, 0
    %v178 = vsel %vm149, %v148, 0
    %vm180 = vcmask 1042432
    %v182 = vsel %vm180, %v91, 0
    %184 = vmatprep.subr.bf16.mxu0 0
    %185 = vmatpush1.bf16.msra.mxu0 0
    %186 = vmatprep.subr.bf16.mxu0 0
    %187 = vmatpush1.bf16.msra.mxu0 0
    %188 = vmatprep.subr.bf16.mxu0 0
    %189 = vmatpush1.bf16.msra.mxu0 0
    %190 = vmatprep.subr.bf16.mxu0 0
    %191 = vmatpush1.bf16.msra.mxu0 0
    %192 = vmatprep.subr.bf16.mxu0 0
    %193 = vmatpush1.bf16.msra.mxu0 0
    %194 = vmatprep.subr.bf16.mxu0 0
    %195 = vmatpush1.bf16.msra.mxu0 0
    %196 = vmatprep.subr.bf16.mxu0 0
    %197 = vmatpush1.bf16.msra.mxu0 0
    %198 = vmatprep.subr.bf16.mxu0 0
    %199 = vmatpush1.bf16.msra.mxu0 %v182
    %200 = vmatprep.subr.bf16.mxu0 0
    %201 = vmatpush2.bf16.msra.mxu0 0
    %202 = vmatprep.subr.bf16.mxu0 0
    %203 = vmatpush2.bf16.msra.mxu0 0
    %204 = vmatprep.subr.bf16.mxu0 0
    %205 = vmatpush2.bf16.msra.mxu0 0
    %206 = vmatprep.subr.bf16.mxu0 0
    %207 = vmatpush2.bf16.msra.mxu0 0
    %208 = vmatprep.subr.bf16.mxu0 0
    %209 = vmatpush2.bf16.msra.mxu0 0
    %210 = vmatprep.subr.bf16.mxu0 0
    %211 = vmatpush2.bf16.msra.mxu0 0
    %212 = vmatprep.subr.bf16.mxu0 0
    %213 = vmatpush2.bf16.msra.mxu0 0
    %214 = vmatprep.subr.bf16.mxu0 0
    %215 = vmatpush2.bf16.msra.mxu0 0
    %216 = vmatprep.mubr.bf16.mxu0 0
    %217 = vmatmul.mubr.bf16.gmra.mxu0 %v151
    %v218 = vpop.f32.mrf.mxu0
    %v219 = vadd.f32 %v97, %v218
    %v220 = vpop.f32.mrf.mxu0
    %v221 = vpop.f32.mrf.mxu0
    %v222 = vadd.f32 %v97, %v221
    %v223 = vpop.f32.mrf.mxu0
    %224 = vmatprep.mubr.bf16.mxu0 0
    %225 = vmatmul.mubr.bf16.gmra.mxu0 %v154
    %v226 = vpop.f32.mrf.mxu0
    %v227 = vadd.f32 %v97, %v226
    %v228 = vpop.f32.mrf.mxu0
    %v229 = vpop.f32.mrf.mxu0
    %v230 = vadd.f32 %v97, %v229
    %v231 = vpop.f32.mrf.mxu0
    %232 = vmatprep.mubr.bf16.mxu0 0
    %233 = vmatmul.mubr.bf16.gmra.mxu0 %v157
    %v234 = vpop.f32.mrf.mxu0
    %v235 = vadd.f32 %v97, %v234
    %v236 = vpop.f32.mrf.mxu0
    %v237 = vpop.f32.mrf.mxu0
    %v238 = vadd.f32 %v97, %v237
    %v239 = vpop.f32.mrf.mxu0
    %240 = vmatprep.mubr.bf16.mxu0 0
    %241 = vmatmul.mubr.bf16.gmra.mxu0 %v160
    %v242 = vpop.f32.mrf.mxu0
    %v243 = vadd.f32 %v97, %v242
    %v244 = vpop.f32.mrf.mxu0
    %v245 = vpop.f32.mrf.mxu0
    %v246 = vadd.f32 %v97, %v245
    %v247 = vpop.f32.mrf.mxu0
    %248 = vmatprep.mubr.bf16.mxu0 0
    %249 = vmatmul.mubr.bf16.gmra.mxu0 %v163
    %v250 = vpop.f32.mrf.mxu0
    %v251 = vadd.f32 %v97, %v250
    %v252 = vpop.f32.mrf.mxu0
    %v253 = vpop.f32.mrf.mxu0
    %v254 = vadd.f32 %v97, %v253
    %v255 = vpop.f32.mrf.mxu0
    %256 = vmatprep.mubr.bf16.mxu0 0
    %257 = vmatmul.mubr.bf16.gmra.mxu0 %v166
    %v258 = vpop.f32.mrf.mxu0
    %v259 = vadd.f32 %v97, %v258
    %v260 = vpop.f32.mrf.mxu0
    %v261 = vpop.f32.mrf.mxu0
    %v262 = vadd.f32 %v97, %v261
    %v263 = vpop.f32.mrf.mxu0
    %264 = vmatprep.mubr.bf16.mxu0 0
    %265 = vmatmul.mubr.bf16.gmra.mxu0 %v169
    %v266 = vpop.f32.mrf.mxu0
    %v267 = vadd.f32 %v97, %v266
    %v268 = vpop.f32.mrf.mxu0
    %v269 = vpop.f32.mrf.mxu0
    %v270 = vadd.f32 %v97, %v269
    %v271 = vpop.f32.mrf.mxu0
    %272 = vmatprep.mubr.bf16.mxu0 0
    %273 = vmatmul.mubr.bf16.gmra.mxu0 %v172
    %v274 = vpop.f32.mrf.mxu0
    %v275 = vadd.f32 %v97, %v274
    %v276 = vpop.f32.mrf.mxu0
    %v277 = vpop.f32.mrf.mxu0
    %v278 = vadd.f32 %v97, %v277
    %v279 = vpop.f32.mrf.mxu0
    %280 = vmatprep.mubr.bf16.mxu0 0
    %281 = vmatmul.mubr.bf16.gmra.mxu0 %v175
    %v282 = vpop.f32.mrf.mxu0
    %v283 = vadd.f32 %v97, %v282
    %v284 = vpop.f32.mrf.mxu0
    %v285 = vpop.f32.mrf.mxu0
    %v286 = vadd.f32 %v97, %v285
    %v287 = vpop.f32.mrf.mxu0
    %288 = vmatprep.mubr.bf16.mxu0 0
    %289 = vmatmul.mubr.bf16.gmra.mxu0 %v178
    %v290 = vpop.f32.mrf.mxu0
    %v291 = vadd.f32 %v97, %v290
    %v292 = vpop.f32.mrf.mxu0
    %v293 = vpop.f32.mrf.mxu0
    %v294 = vadd.f32 %v97, %v293
    %v295 = vpop.f32.mrf.mxu0
    %296 = vdwg.mxu0
    %v297 = vmul.f32 %v219, 0.2
    %v298 = vmul.f32 %v222, 0.2
    %v299 = vmul.f32 %v227, 0.2
    %v300 = vmul.f32 %v230, 0.2
    %v301 = vmul.f32 %v235, 0.2
    %v302 = vmul.f32 %v238, 0.2
    %v303 = vmul.f32 %v243, 0.2
    %v304 = vmul.f32 %v246, 0.2
    %v305 = vmul.f32 %v251, 0.2
    %v306 = vmul.f32 %v254, 0.2
    %v307 = vmul.f32 %v259, 0.2
    %v308 = vmul.f32 %v262, 0.2
    %v309 = vmul.f32 %v267, 0.2
    %v310 = vmul.f32 %v270, 0.2
    %v311 = vmul.f32 %v275, 0.2
    %v312 = vmul.f32 %v278, 0.2
    %v313 = vmul.f32 %v283, 0.2
    %v314 = vmul.f32 %v286, 0.2
    %v315 = vmul.f32 %v291, 0.2
    %v316 = vmul.f32 %v294, 0.2
    %v317 = vmax.f32 %v219, %v297
    %v318 = vmax.f32 %v222, %v298
    %v319 = vmax.f32 %v227, %v299
    %v320 = vmax.f32 %v230, %v300
    %v321 = vmax.f32 %v235, %v301
    %v322 = vmax.f32 %v238, %v302
    %v323 = vmax.f32 %v243, %v303
    %v324 = vmax.f32 %v246, %v304
    %v325 = vmax.f32 %v251, %v305
    %v326 = vmax.f32 %v254, %v306
    %v327 = vmax.f32 %v259, %v307
    %v328 = vmax.f32 %v262, %v308
    %v329 = vmax.f32 %v267, %v309
    %v330 = vmax.f32 %v270, %v310
    %v331 = vmax.f32 %v275, %v311
    %v332 = vmax.f32 %v278, %v312
    %v333 = vmax.f32 %v283, %v313
    %v334 = vmax.f32 %v286, %v314
    %v335 = vmax.f32 %v291, %v315
    %v336 = vmax.f32 %v294, %v316
    %v337 = vpack.c.bf16 %v318, %v317
    %v338 = vpack.c.bf16 %v320, %v319
    %v339 = vpack.c.bf16 %v322, %v321
    %v340 = vpack.c.bf16 %v324, %v323
    %v341 = vpack.c.bf16 %v326, %v325
    %v342 = vpack.c.bf16 %v328, %v327
    %v343 = vpack.c.bf16 %v330, %v329
    %v344 = vpack.c.bf16 %v332, %v331
    %v345 = vpack.c.bf16 %v334, %v333
    %v346 = vpack.c.bf16 %v336, %v335
    %v347 = vld [vmem:[%s3] sm:$0xf]
    %v348 = vld [vmem:[%s3 + $0x4] sm:$0xf]
    %v349 = vld [vmem:[%s3 + $0x8] sm:$0xf]
    %v350 = vld [vmem:[%s3 + $0xc] sm:$0xf]
    %v351 = vld [vmem:[%s3 + $0x10] sm:$0xf]
    %v352 = vld [vmem:[%s3 + $0x14] sm:$0xf]
    %v353 = vld [vmem:[%s3 + $0x18] sm:$0xf]
    %v354 = vld [vmem:[%s3 + $0x1c] sm:$0xf]
    %v355 = vld [vmem:[#allocation5] sm:$0x1]
    %v357 = vlaneseq
    %v358 = vshrl.u32 %v357, 7
    %v359 = vsub.s32 0, %v358
    %v360 = vrot.slane %v355, %v359
    %v370 = vunpack.c.l.b16 %v347
    %v371 = vunpack.c.l.b16 %v348
    %v372 = vunpack.c.l.b16 %v349
    %v373 = vunpack.c.l.b16 %v350
    %v374 = vunpack.c.l.b16 %v351
    %v375 = vunpack.c.l.b16 %v352
    %v376 = vunpack.c.l.b16 %v353
    %v377 = vunpack.c.l.b16 %v354
    %v378 = vpack.c.b16 %v371, %v370
    %v379 = vpack.c.b16 %v373, %v372
    %v380 = vpack.c.b16 %v375, %v374
    %v381 = vpack.c.b16 %v377, %v376
    %vm386 = vcmask 523264
    %v388 = vsel %vm386, %v337, 0
    %v391 = vsel %vm386, %v338, 0
    %v394 = vsel %vm386, %v339, 0
    %v397 = vsel %vm386, %v340, 0
    %v400 = vsel %vm386, %v341, 0
    %v403 = vsel %vm386, %v342, 0
    %v406 = vsel %vm386, %v343, 0
    %v409 = vsel %vm386, %v344, 0
    %v412 = vsel %vm386, %v345, 0
    %v415 = vsel %vm386, %v346, 0
    %417 = vmatprep.subr.bf16.mxu0 0
    %418 = vmatpush1.bf16.msra.mxu0 0
    %419 = vmatprep.subr.bf16.mxu0 0
    %420 = vmatpush1.bf16.msra.mxu0 0
    %421 = vmatprep.subr.bf16.mxu0 0
    %422 = vmatpush1.bf16.msra.mxu0 0
    %423 = vmatprep.subr.bf16.mxu0 0
    %424 = vmatpush1.bf16.msra.mxu0 0
    %425 = vmatprep.subr.bf16.mxu0 0
    %426 = vmatpush1.bf16.msra.mxu0 %v381
    %427 = vmatprep.subr.bf16.mxu0 0
    %428 = vmatpush1.bf16.msra.mxu0 %v380
    %429 = vmatprep.subr.bf16.mxu0 0
    %430 = vmatpush1.bf16.msra.mxu0 %v379
    %431 = vmatprep.subr.bf16.mxu0 0
    %432 = vmatpush1.bf16.msra.mxu0 %v378
    %433 = vmatprep.subr.bf16.mxu0 0
    %434 = vmatpush2.bf16.msra.mxu0 0
    %435 = vmatprep.subr.bf16.mxu0 0
    %436 = vmatpush2.bf16.msra.mxu0 0
    %437 = vmatprep.subr.bf16.mxu0 0
    %438 = vmatpush2.bf16.msra.mxu0 0
    %439 = vmatprep.subr.bf16.mxu0 0
    %440 = vmatpush2.bf16.msra.mxu0 0
    %441 = vmatprep.subr.bf16.mxu0 0
    %442 = vmatpush2.bf16.msra.mxu0 0
    %443 = vmatprep.subr.bf16.mxu0 0
    %444 = vmatpush2.bf16.msra.mxu0 0
    %445 = vmatprep.subr.bf16.mxu0 0
    %446 = vmatpush2.bf16.msra.mxu0 0
    %447 = vmatprep.subr.bf16.mxu0 0
    %448 = vmatpush2.bf16.msra.mxu0 0
    %449 = vmatprep.mubr.bf16.mxu0 0
    %450 = vmatmul.mubr.bf16.gmra.mxu0 %v388
    %v451 = vpop.f32.mrf.mxu0
    %v452 = vadd.f32 %v360, %v451
    %v453 = vpop.f32.mrf.mxu0
    %v454 = vpop.f32.mrf.mxu0
    %v455 = vadd.f32 %v360, %v454
    %v456 = vpop.f32.mrf.mxu0
    %457 = vmatprep.mubr.bf16.mxu0 0
    %458 = vmatmul.mubr.bf16.gmra.mxu0 %v391
    %v459 = vpop.f32.mrf.mxu0
    %v460 = vadd.f32 %v360, %v459
    %v461 = vpop.f32.mrf.mxu0
    %v462 = vpop.f32.mrf.mxu0
    %v463 = vadd.f32 %v360, %v462
    %v464 = vpop.f32.mrf.mxu0
    %465 = vmatprep.mubr.bf16.mxu0 0
    %466 = vmatmul.mubr.bf16.gmra.mxu0 %v394
    %v467 = vpop.f32.mrf.mxu0
    %v468 = vadd.f32 %v360, %v467
    %v469 = vpop.f32.mrf.mxu0
    %v470 = vpop.f32.mrf.mxu0
    %v471 = vadd.f32 %v360, %v470
    %v472 = vpop.f32.mrf.mxu0
    %473 = vmatprep.mubr.bf16.mxu0 0
    %474 = vmatmul.mubr.bf16.gmra.mxu0 %v397
    %v475 = vpop.f32.mrf.mxu0
    %v476 = vadd.f32 %v360, %v475
    %v477 = vpop.f32.mrf.mxu0
    %v478 = vpop.f32.mrf.mxu0
    %v479 = vadd.f32 %v360, %v478
    %v480 = vpop.f32.mrf.mxu0
    %481 = vmatprep.mubr.bf16.mxu0 0
    %482 = vmatmul.mubr.bf16.gmra.mxu0 %v400
    %v483 = vpop.f32.mrf.mxu0
    %v484 = vadd.f32 %v360, %v483
    %v485 = vpop.f32.mrf.mxu0
    %v486 = vpop.f32.mrf.mxu0
    %v487 = vadd.f32 %v360, %v486
    %v488 = vpop.f32.mrf.mxu0
    %489 = vmatprep.mubr.bf16.mxu0 0
    %490 = vmatmul.mubr.bf16.gmra.mxu0 %v403
    %v491 = vpop.f32.mrf.mxu0
    %v492 = vadd.f32 %v360, %v491
    %v493 = vpop.f32.mrf.mxu0
    %v494 = vpop.f32.mrf.mxu0
    %v495 = vadd.f32 %v360, %v494
    %v496 = vpop.f32.mrf.mxu0
    %497 = vmatprep.mubr.bf16.mxu0 0
    %498 = vmatmul.mubr.bf16.gmra.mxu0 %v406
    %v499 = vpop.f32.mrf.mxu0
    %v500 = vadd.f32 %v360, %v499
    %v501 = vpop.f32.mrf.mxu0
    %v502 = vpop.f32.mrf.mxu0
    %v503 = vadd.f32 %v360, %v502
    %v504 = vpop.f32.mrf.mxu0
    %505 = vmatprep.mubr.bf16.mxu0 0
    %506 = vmatmul.mubr.bf16.gmra.mxu0 %v409
    %v507 = vpop.f32.mrf.mxu0
    %v508 = vadd.f32 %v360, %v507
    %v509 = vpop.f32.mrf.mxu0
    %v510 = vpop.f32.mrf.mxu0
    %v511 = vadd.f32 %v360, %v510
    %v512 = vpop.f32.mrf.mxu0
    %513 = vmatprep.mubr.bf16.mxu0 0
    %514 = vmatmul.mubr.bf16.gmra.mxu0 %v412
    %v515 = vpop.f32.mrf.mxu0
    %v516 = vadd.f32 %v360, %v515
    %v517 = vpop.f32.mrf.mxu0
    %v518 = vpop.f32.mrf.mxu0
    %v519 = vadd.f32 %v360, %v518
    %v520 = vpop.f32.mrf.mxu0
    %521 = vmatprep.mubr.bf16.mxu0 0
    %522 = vmatmul.mubr.bf16.gmra.mxu0 %v415
    %v523 = vpop.f32.mrf.mxu0
    %v524 = vadd.f32 %v360, %v523
    %v525 = vpop.f32.mrf.mxu0
    %v526 = vpop.f32.mrf.mxu0
    %v527 = vadd.f32 %v360, %v526
    %v528 = vpop.f32.mrf.mxu0
    %529 = vdwg.mxu0
    %v530 = vmul.f32 %v452, 0.2
    %v531 = vmul.f32 %v455, 0.2
    %v532 = vmul.f32 %v460, 0.2
    %v533 = vmul.f32 %v463, 0.2
    %v534 = vmul.f32 %v468, 0.2
    %v535 = vmul.f32 %v471, 0.2
    %v536 = vmul.f32 %v476, 0.2
    %v537 = vmul.f32 %v479, 0.2
    %v538 = vmul.f32 %v484, 0.2
    %v539 = vmul.f32 %v487, 0.2
    %v540 = vmul.f32 %v492, 0.2
    %v541 = vmul.f32 %v495, 0.2
    %v542 = vmul.f32 %v500, 0.2
    %v543 = vmul.f32 %v503, 0.2
    %v544 = vmul.f32 %v508, 0.2
    %v545 = vmul.f32 %v511, 0.2
    %v546 = vmul.f32 %v516, 0.2
    %v547 = vmul.f32 %v519, 0.2
    %v548 = vmul.f32 %v524, 0.2
    %v549 = vmul.f32 %v527, 0.2
    %v550 = vmax.f32 %v452, %v530
    %v551 = vmax.f32 %v455, %v531
    %v552 = vmax.f32 %v460, %v532
    %v553 = vmax.f32 %v463, %v533
    %v554 = vmax.f32 %v468, %v534
    %v555 = vmax.f32 %v471, %v535
    %v556 = vmax.f32 %v476, %v536
    %v557 = vmax.f32 %v479, %v537
    %v558 = vmax.f32 %v484, %v538
    %v559 = vmax.f32 %v487, %v539
    %v560 = vmax.f32 %v492, %v540
    %v561 = vmax.f32 %v495, %v541
    %v562 = vmax.f32 %v500, %v542
    %v563 = vmax.f32 %v503, %v543
    %v564 = vmax.f32 %v508, %v544
    %v565 = vmax.f32 %v511, %v545
    %v566 = vmax.f32 %v516, %v546
    %v567 = vmax.f32 %v519, %v547
    %v568 = vmax.f32 %v524, %v548
    %v569 = vmax.f32 %v527, %v549
    %v570 = vpack.c.bf16 %v551, %v550
    %v571 = vpack.c.bf16 %v553, %v552
    %v572 = vpack.c.bf16 %v555, %v554
    %v573 = vpack.c.bf16 %v557, %v556
    %v574 = vpack.c.bf16 %v559, %v558
    %v575 = vpack.c.bf16 %v561, %v560
    %v576 = vpack.c.bf16 %v563, %v562
    %v577 = vpack.c.bf16 %v565, %v564
    %v578 = vpack.c.bf16 %v567, %v566
    %v579 = vpack.c.bf16 %v569, %v568
    %v580 = vld [vmem:[%s5] sm:$0xf]
    %v581 = vld [vmem:[%s5 + $0x4] sm:$0xf]
    %v582 = vld [vmem:[%s5 + $0x8] sm:$0xf]
    %v583 = vld [vmem:[%s5 + $0xc] sm:$0xf]
    %v584 = vld [vmem:[%s5 + $0x10] sm:$0xf]
    %v585 = vld [vmem:[%s5 + $0x14] sm:$0xf]
    %v586 = vld [vmem:[%s5 + $0x18] sm:$0xf]
    %v587 = vld [vmem:[%s5 + $0x1c] sm:$0xf]
    %v588 = vld [vmem:[%s5 + $0x20] sm:$0xf]
    %v589 = vld [vmem:[%s5 + $0x24] sm:$0xf]
    %v590 = vld [vmem:[%s5 + $0x28] sm:$0xf]
    %v591 = vld [vmem:[%s5 + $0x2c] sm:$0xf]
    %v592 = vld [vmem:[%s5 + $0x30] sm:$0xf]
    %v593 = vld [vmem:[%s5 + $0x34] sm:$0xf]
    %v594 = vld [vmem:[%s5 + $0x38] sm:$0xf]
    %v595 = vld [vmem:[%s5 + $0x3c] sm:$0xf]
    %v596 = vld [vmem:[%s6] sm:$0x1]
    %v598 = vlaneseq
    %v599 = vshrl.u32 %v598, 7
    %v600 = vsub.s32 0, %v599
    %v601 = vrot.slane %v596, %v600
    %v619 = vunpack.c.l.b16 %v580
    %v620 = vunpack.c.l.b16 %v581
    %v621 = vunpack.c.l.b16 %v582
    %v622 = vunpack.c.l.b16 %v583
    %v623 = vunpack.c.l.b16 %v584
    %v624 = vunpack.c.l.b16 %v585
    %v625 = vunpack.c.l.b16 %v586
    %v626 = vunpack.c.l.b16 %v587
    %v627 = vunpack.c.l.b16 %v588
    %v628 = vunpack.c.l.b16 %v589
    %v629 = vunpack.c.l.b16 %v590
    %v630 = vunpack.c.l.b16 %v591
    %v631 = vunpack.c.l.b16 %v592
    %v632 = vunpack.c.l.b16 %v593
    %v633 = vunpack.c.l.b16 %v594
    %v634 = vunpack.c.l.b16 %v595
    %v635 = vpack.c.b16 %v620, %v619
    %v636 = vpack.c.b16 %v622, %v621
    %v637 = vpack.c.b16 %v624, %v623
    %v638 = vpack.c.b16 %v626, %v625
    %v639 = vpack.c.b16 %v628, %v627
    %v640 = vpack.c.b16 %v630, %v629
    %v641 = vpack.c.b16 %v632, %v631
    %v642 = vpack.c.b16 %v634, %v633
    %651 = vmatprep.subr.bf16.mxu0 0
    %652 = vmatpush1.bf16.msra.mxu0 %v642
    %653 = vmatprep.subr.bf16.mxu0 0
    %654 = vmatpush1.bf16.msra.mxu0 %v641
    %655 = vmatprep.subr.bf16.mxu0 0
    %656 = vmatpush1.bf16.msra.mxu0 %v640
    %657 = vmatprep.subr.bf16.mxu0 0
    %658 = vmatpush1.bf16.msra.mxu0 %v639
    %659 = vmatprep.subr.bf16.mxu0 0
    %660 = vmatpush1.bf16.msra.mxu0 %v638
    %661 = vmatprep.subr.bf16.mxu0 0
    %662 = vmatpush1.bf16.msra.mxu0 %v637
    %663 = vmatprep.subr.bf16.mxu0 0
    %664 = vmatpush1.bf16.msra.mxu0 %v636
    %665 = vmatprep.subr.bf16.mxu0 0
    %666 = vmatpush1.bf16.msra.mxu0 %v635
    %667 = vmatprep.subr.bf16.mxu0 0
    %668 = vmatpush2.bf16.msra.mxu0 0
    %669 = vmatprep.subr.bf16.mxu0 0
    %670 = vmatpush2.bf16.msra.mxu0 0
    %671 = vmatprep.subr.bf16.mxu0 0
    %672 = vmatpush2.bf16.msra.mxu0 0
    %673 = vmatprep.subr.bf16.mxu0 0
    %674 = vmatpush2.bf16.msra.mxu0 0
    %675 = vmatprep.subr.bf16.mxu0 0
    %676 = vmatpush2.bf16.msra.mxu0 0
    %677 = vmatprep.subr.bf16.mxu0 0
    %678 = vmatpush2.bf16.msra.mxu0 0
    %679 = vmatprep.subr.bf16.mxu0 0
    %680 = vmatpush2.bf16.msra.mxu0 0
    %681 = vmatprep.subr.bf16.mxu0 0
    %682 = vmatpush2.bf16.msra.mxu0 0
    %683 = vmatprep.mubr.bf16.mxu0 0
    %684 = vmatmul.mubr.bf16.gmra.mxu0 %v570
    %v685 = vpop.f32.mrf.mxu0
    %v686 = vadd.f32 %v601, %v685
    %v687 = vpop.f32.mrf.mxu0
    %v688 = vpop.f32.mrf.mxu0
    %v689 = vadd.f32 %v601, %v688
    %v690 = vpop.f32.mrf.mxu0
    %691 = vmatprep.mubr.bf16.mxu0 0
    %692 = vmatmul.mubr.bf16.gmra.mxu0 %v571
    %v693 = vpop.f32.mrf.mxu0
    %v694 = vadd.f32 %v601, %v693
    %v695 = vpop.f32.mrf.mxu0
    %v696 = vpop.f32.mrf.mxu0
    %v697 = vadd.f32 %v601, %v696
    %v698 = vpop.f32.mrf.mxu0
    %699 = vmatprep.mubr.bf16.mxu0 0
    %700 = vmatmul.mubr.bf16.gmra.mxu0 %v572
    %v701 = vpop.f32.mrf.mxu0
    %v702 = vadd.f32 %v601, %v701
    %v703 = vpop.f32.mrf.mxu0
    %v704 = vpop.f32.mrf.mxu0
    %v705 = vadd.f32 %v601, %v704
    %v706 = vpop.f32.mrf.mxu0
    %707 = vmatprep.mubr.bf16.mxu0 0
    %708 = vmatmul.mubr.bf16.gmra.mxu0 %v573
    %v709 = vpop.f32.mrf.mxu0
    %v710 = vadd.f32 %v601, %v709
    %v711 = vpop.f32.mrf.mxu0
    %v712 = vpop.f32.mrf.mxu0
    %v713 = vadd.f32 %v601, %v712
    %v714 = vpop.f32.mrf.mxu0
    %715 = vmatprep.mubr.bf16.mxu0 0
    %716 = vmatmul.mubr.bf16.gmra.mxu0 %v574
    %v717 = vpop.f32.mrf.mxu0
    %v718 = vadd.f32 %v601, %v717
    %v719 = vpop.f32.mrf.mxu0
    %v720 = vpop.f32.mrf.mxu0
    %v721 = vadd.f32 %v601, %v720
    %v722 = vpop.f32.mrf.mxu0
    %723 = vmatprep.mubr.bf16.mxu0 0
    %724 = vmatmul.mubr.bf16.gmra.mxu0 %v575
    %v725 = vpop.f32.mrf.mxu0
    %v726 = vadd.f32 %v601, %v725
    %v727 = vpop.f32.mrf.mxu0
    %v728 = vpop.f32.mrf.mxu0
    %v729 = vadd.f32 %v601, %v728
    %v730 = vpop.f32.mrf.mxu0
    %731 = vmatprep.mubr.bf16.mxu0 0
    %732 = vmatmul.mubr.bf16.gmra.mxu0 %v576
    %v733 = vpop.f32.mrf.mxu0
    %v734 = vadd.f32 %v601, %v733
    %v735 = vpop.f32.mrf.mxu0
    %v736 = vpop.f32.mrf.mxu0
    %v737 = vadd.f32 %v601, %v736
    %v738 = vpop.f32.mrf.mxu0
    %739 = vmatprep.mubr.bf16.mxu0 0
    %740 = vmatmul.mubr.bf16.gmra.mxu0 %v577
    %v741 = vpop.f32.mrf.mxu0
    %v742 = vadd.f32 %v601, %v741
    %v743 = vpop.f32.mrf.mxu0
    %v744 = vpop.f32.mrf.mxu0
    %v745 = vadd.f32 %v601, %v744
    %v746 = vpop.f32.mrf.mxu0
    %747 = vmatprep.mubr.bf16.mxu0 0
    %748 = vmatmul.mubr.bf16.gmra.mxu0 %v578
    %v749 = vpop.f32.mrf.mxu0
    %v750 = vadd.f32 %v601, %v749
    %v751 = vpop.f32.mrf.mxu0
    %v752 = vpop.f32.mrf.mxu0
    %v753 = vadd.f32 %v601, %v752
    %v754 = vpop.f32.mrf.mxu0
    %755 = vmatprep.mubr.bf16.mxu0 0
    %756 = vmatmul.mubr.bf16.gmra.mxu0 %v579
    %v757 = vpop.f32.mrf.mxu0
    %v758 = vadd.f32 %v601, %v757
    %v759 = vpop.f32.mrf.mxu0
    %v760 = vpop.f32.mrf.mxu0
    %v761 = vadd.f32 %v601, %v760
    %v762 = vpop.f32.mrf.mxu0
    %763 = vdwg.mxu0
    %v764 = vmul.f32 %v686, 0.2
    %v765 = vmul.f32 %v689, 0.2
    %v766 = vmul.f32 %v694, 0.2
    %v767 = vmul.f32 %v697, 0.2
    %v768 = vmul.f32 %v702, 0.2
    %v769 = vmul.f32 %v705, 0.2
    %v770 = vmul.f32 %v710, 0.2
    %v771 = vmul.f32 %v713, 0.2
    %v772 = vmul.f32 %v718, 0.2
    %v773 = vmul.f32 %v721, 0.2
    %v774 = vmul.f32 %v726, 0.2
    %v775 = vmul.f32 %v729, 0.2
    %v776 = vmul.f32 %v734, 0.2
    %v777 = vmul.f32 %v737, 0.2
    %v778 = vmul.f32 %v742, 0.2
    %v779 = vmul.f32 %v745, 0.2
    %v780 = vmul.f32 %v750, 0.2
    %v781 = vmul.f32 %v753, 0.2
    %v782 = vmul.f32 %v758, 0.2
    %v783 = vmul.f32 %v761, 0.2
    %v784 = vmax.f32 %v686, %v764
    %v785 = vmax.f32 %v689, %v765
    %v786 = vmax.f32 %v694, %v766
    %v787 = vmax.f32 %v697, %v767
    %v788 = vmax.f32 %v702, %v768
    %v789 = vmax.f32 %v705, %v769
    %v790 = vmax.f32 %v710, %v770
    %v791 = vmax.f32 %v713, %v771
    %v792 = vmax.f32 %v718, %v772
    %v793 = vmax.f32 %v721, %v773
    %v794 = vmax.f32 %v726, %v774
    %v795 = vmax.f32 %v729, %v775
    %v796 = vmax.f32 %v734, %v776
    %v797 = vmax.f32 %v737, %v777
    %v798 = vmax.f32 %v742, %v778
    %v799 = vmax.f32 %v745, %v779
    %v800 = vmax.f32 %v750, %v780
    %v801 = vmax.f32 %v753, %v781
    %v802 = vmax.f32 %v758, %v782
    %v803 = vmax.f32 %v761, %v783
    %v804 = vpack.c.bf16 %v785, %v784
    %v805 = vpack.c.bf16 %v787, %v786
    %v806 = vpack.c.bf16 %v789, %v788
    %v807 = vpack.c.bf16 %v791, %v790
    %v808 = vpack.c.bf16 %v793, %v792
    %v809 = vpack.c.bf16 %v795, %v794
    %v810 = vpack.c.bf16 %v797, %v796
    %v811 = vpack.c.bf16 %v799, %v798
    %v812 = vpack.c.bf16 %v801, %v800
    %v813 = vpack.c.bf16 %v803, %v802
    %v814 = vld [vmem:[#allocation7] sm:$0xf]
    %v815 = vld [vmem:[#allocation7 + $0x4] sm:$0xf]
    %v816 = vld [vmem:[#allocation7 + $0x8] sm:$0xf]
    %v817 = vld [vmem:[#allocation7 + $0xc] sm:$0xf]
    %v818 = vld [vmem:[#allocation7 + $0x10] sm:$0xf]
    %v819 = vld [vmem:[#allocation7 + $0x14] sm:$0xf]
    %v820 = vld [vmem:[#allocation7 + $0x18] sm:$0xf]
    %v821 = vld [vmem:[#allocation7 + $0x1c] sm:$0xf]
    %v822 = vld [vmem:[#allocation7 + $0x20] sm:$0xf]
    %v823 = vld [vmem:[#allocation7 + $0x24] sm:$0xf]
    %v824 = vld [vmem:[#allocation7 + $0x28] sm:$0xf]
    %v825 = vld [vmem:[#allocation7 + $0x2c] sm:$0xf]
    %v826 = vld [vmem:[#allocation7 + $0x30] sm:$0xf]
    %v827 = vld [vmem:[#allocation7 + $0x34] sm:$0xf]
    %v828 = vld [vmem:[#allocation7 + $0x38] sm:$0xf]
    %v829 = vld [vmem:[#allocation7 + $0x3c] sm:$0xf]
    %v830 = vld [vmem:[%s8] sm:$0x1]
    %v832 = vlaneseq
    %v833 = vshrl.u32 %v832, 7
    %v834 = vsub.s32 0, %v833
    %v835 = vrot.slane %v830, %v834
    %v853 = vunpack.c.l.b16 %v814
    %v854 = vunpack.c.l.b16 %v815
    %v855 = vunpack.c.l.b16 %v816
    %v856 = vunpack.c.l.b16 %v817
    %v857 = vunpack.c.l.b16 %v818
    %v858 = vunpack.c.l.b16 %v819
    %v859 = vunpack.c.l.b16 %v820
    %v860 = vunpack.c.l.b16 %v821
    %v861 = vunpack.c.l.b16 %v822
    %v862 = vunpack.c.l.b16 %v823
    %v863 = vunpack.c.l.b16 %v824
    %v864 = vunpack.c.l.b16 %v825
    %v865 = vunpack.c.l.b16 %v826
    %v866 = vunpack.c.l.b16 %v827
    %v867 = vunpack.c.l.b16 %v828
    %v868 = vunpack.c.l.b16 %v829
    %v869 = vpack.c.b16 %v854, %v853
    %v870 = vpack.c.b16 %v856, %v855
    %v871 = vpack.c.b16 %v858, %v857
    %v872 = vpack.c.b16 %v860, %v859
    %v873 = vpack.c.b16 %v862, %v861
    %v874 = vpack.c.b16 %v864, %v863
    %v875 = vpack.c.b16 %v866, %v865
    %v876 = vpack.c.b16 %v868, %v867
    %885 = vmatprep.subr.bf16.mxu0 0
    %886 = vmatpush1.bf16.msra.mxu0 %v876
    %887 = vmatprep.subr.bf16.mxu0 0
    %888 = vmatpush1.bf16.msra.mxu0 %v875
    %889 = vmatprep.subr.bf16.mxu0 0
    %890 = vmatpush1.bf16.msra.mxu0 %v874
    %891 = vmatprep.subr.bf16.mxu0 0
    %892 = vmatpush1.bf16.msra.mxu0 %v873
    %893 = vmatprep.subr.bf16.mxu0 0
    %894 = vmatpush1.bf16.msra.mxu0 %v872
    %895 = vmatprep.subr.bf16.mxu0 0
    %896 = vmatpush1.bf16.msra.mxu0 %v871
    %897 = vmatprep.subr.bf16.mxu0 0
    %898 = vmatpush1.bf16.msra.mxu0 %v870
    %899 = vmatprep.subr.bf16.mxu0 0
    %900 = vmatpush1.bf16.msra.mxu0 %v869
    %901 = vmatprep.subr.bf16.mxu0 0
    %902 = vmatpush2.bf16.msra.mxu0 0
    %903 = vmatprep.subr.bf16.mxu0 0
    %904 = vmatpush2.bf16.msra.mxu0 0
    %905 = vmatprep.subr.bf16.mxu0 0
    %906 = vmatpush2.bf16.msra.mxu0 0
    %907 = vmatprep.subr.bf16.mxu0 0
    %908 = vmatpush2.bf16.msra.mxu0 0
    %909 = vmatprep.subr.bf16.mxu0 0
    %910 = vmatpush2.bf16.msra.mxu0 0
    %911 = vmatprep.subr.bf16.mxu0 0
    %912 = vmatpush2.bf16.msra.mxu0 0
    %913 = vmatprep.subr.bf16.mxu0 0
    %914 = vmatpush2.bf16.msra.mxu0 0
    %915 = vmatprep.subr.bf16.mxu0 0
    %916 = vmatpush2.bf16.msra.mxu0 0
    %917 = vmatprep.mubr.bf16.mxu0 0
    %918 = vmatmul.mubr.bf16.gmra.mxu0 %v804
    %v919 = vpop.f32.mrf.mxu0
    %v920 = vadd.f32 %v835, %v919
    %v921 = vpop.f32.mrf.mxu0
    %v922 = vpop.f32.mrf.mxu0
    %v923 = vadd.f32 %v835, %v922
    %v924 = vpop.f32.mrf.mxu0
    %925 = vmatprep.mubr.bf16.mxu0 0
    %926 = vmatmul.mubr.bf16.gmra.mxu0 %v805
    %v927 = vpop.f32.mrf.mxu0
    %v928 = vadd.f32 %v835, %v927
    %v929 = vpop.f32.mrf.mxu0
    %v930 = vpop.f32.mrf.mxu0
    %v931 = vadd.f32 %v835, %v930
    %v932 = vpop.f32.mrf.mxu0
    %933 = vmatprep.mubr.bf16.mxu0 0
    %934 = vmatmul.mubr.bf16.gmra.mxu0 %v806
    %v935 = vpop.f32.mrf.mxu0
    %v936 = vadd.f32 %v835, %v935
    %v937 = vpop.f32.mrf.mxu0
    %v938 = vpop.f32.mrf.mxu0
    %v939 = vadd.f32 %v835, %v938
    %v940 = vpop.f32.mrf.mxu0
    %941 = vmatprep.mubr.bf16.mxu0 0
    %942 = vmatmul.mubr.bf16.gmra.mxu0 %v807
    %v943 = vpop.f32.mrf.mxu0
    %v944 = vadd.f32 %v835, %v943
    %v945 = vpop.f32.mrf.mxu0
    %v946 = vpop.f32.mrf.mxu0
    %v947 = vadd.f32 %v835, %v946
    %v948 = vpop.f32.mrf.mxu0
    %949 = vmatprep.mubr.bf16.mxu0 0
    %950 = vmatmul.mubr.bf16.gmra.mxu0 %v808
    %v951 = vpop.f32.mrf.mxu0
    %v952 = vadd.f32 %v835, %v951
    %v953 = vpop.f32.mrf.mxu0
    %v954 = vpop.f32.mrf.mxu0
    %v955 = vadd.f32 %v835, %v954
    %v956 = vpop.f32.mrf.mxu0
    %957 = vmatprep.mubr.bf16.mxu0 0
    %958 = vmatmul.mubr.bf16.gmra.mxu0 %v809
    %v959 = vpop.f32.mrf.mxu0
    %v960 = vadd.f32 %v835, %v959
    %v961 = vpop.f32.mrf.mxu0
    %v962 = vpop.f32.mrf.mxu0
    %v963 = vadd.f32 %v835, %v962
    %v964 = vpop.f32.mrf.mxu0
    %965 = vmatprep.mubr.bf16.mxu0 0
    %966 = vmatmul.mubr.bf16.gmra.mxu0 %v810
    %v967 = vpop.f32.mrf.mxu0
    %v968 = vadd.f32 %v835, %v967
    %v969 = vpop.f32.mrf.mxu0
    %v970 = vpop.f32.mrf.mxu0
    %v971 = vadd.f32 %v835, %v970
    %v972 = vpop.f32.mrf.mxu0
    %973 = vmatprep.mubr.bf16.mxu0 0
    %974 = vmatmul.mubr.bf16.gmra.mxu0 %v811
    %v975 = vpop.f32.mrf.mxu0
    %v976 = vadd.f32 %v835, %v975
    %v977 = vpop.f32.mrf.mxu0
    %v978 = vpop.f32.mrf.mxu0
    %v979 = vadd.f32 %v835, %v978
    %v980 = vpop.f32.mrf.mxu0
    %981 = vmatprep.mubr.bf16.mxu0 0
    %982 = vmatmul.mubr.bf16.gmra.mxu0 %v812
    %v983 = vpop.f32.mrf.mxu0
    %v984 = vadd.f32 %v835, %v983
    %v985 = vpop.f32.mrf.mxu0
    %v986 = vpop.f32.mrf.mxu0
    %v987 = vadd.f32 %v835, %v986
    %v988 = vpop.f32.mrf.mxu0
    %989 = vmatprep.mubr.bf16.mxu0 0
    %990 = vmatmul.mubr.bf16.gmra.mxu0 %v813
    %v991 = vpop.f32.mrf.mxu0
    %v992 = vadd.f32 %v835, %v991
    %v993 = vpop.f32.mrf.mxu0
    %v994 = vpop.f32.mrf.mxu0
    %v995 = vadd.f32 %v835, %v994
    %v996 = vpop.f32.mrf.mxu0
    %997 = vdwg.mxu0
    %v998 = vpack.c.bf16 %v923, %v920
    %v999 = vpack.c.bf16 %v931, %v928
    %v1000 = vpack.c.bf16 %v939, %v936
    %v1001 = vpack.c.bf16 %v947, %v944
    %v1002 = vpack.c.bf16 %v955, %v952
    %v1003 = vpack.c.bf16 %v963, %v960
    %v1004 = vpack.c.bf16 %v971, %v968
    %v1005 = vpack.c.bf16 %v979, %v976
    %v1006 = vpack.c.bf16 %v987, %v984
    %v1007 = vpack.c.bf16 %v995, %v992
    %v1018 = vunpack.c.l.b16 %v998
    %v1019 = vunpack.c.h.b16 %v998
    %v1020 = vunpack.c.l.b16 %v999
    %v1021 = vunpack.c.h.b16 %v999
    %v1022 = vunpack.c.l.b16 %v1000
    %v1023 = vunpack.c.h.b16 %v1000
    %v1024 = vunpack.c.l.b16 %v1001
    %v1025 = vunpack.c.h.b16 %v1001
    %v1026 = vunpack.c.l.b16 %v1002
    %v1027 = vunpack.c.h.b16 %v1002
    %v1028 = vunpack.c.l.b16 %v1003
    %v1029 = vunpack.c.h.b16 %v1003
    %v1030 = vunpack.c.l.b16 %v1004
    %v1031 = vunpack.c.h.b16 %v1004
    %v1032 = vunpack.c.l.b16 %v1005
    %v1033 = vunpack.c.h.b16 %v1005
    %v1034 = vunpack.c.l.b16 %v1006
    %v1035 = vunpack.c.h.b16 %v1006
    %v1036 = vunpack.c.l.b16 %v1007
    %v1037 = vunpack.c.h.b16 %v1007
    %v1038 = vpack.c.b16 %v1018, %v1018
    %v1039 = vpack.c.b16 %v1019, %v1019
    %v1040 = vpack.c.b16 %v1020, %v1020
    %v1041 = vpack.c.b16 %v1021, %v1021
    %v1042 = vpack.c.b16 %v1022, %v1022
    %v1043 = vpack.c.b16 %v1023, %v1023
    %v1044 = vpack.c.b16 %v1024, %v1024
    %v1045 = vpack.c.b16 %v1025, %v1025
    %v1046 = vpack.c.b16 %v1026, %v1026
    %v1047 = vpack.c.b16 %v1027, %v1027
    %v1048 = vpack.c.b16 %v1028, %v1028
    %v1049 = vpack.c.b16 %v1029, %v1029
    %v1050 = vpack.c.b16 %v1030, %v1030
    %v1051 = vpack.c.b16 %v1031, %v1031
    %v1052 = vpack.c.b16 %v1032, %v1032
    %v1053 = vpack.c.b16 %v1033, %v1033
    %v1054 = vpack.c.b16 %v1034, %v1034
    %v1055 = vpack.c.b16 %v1035, %v1035
    %v1056 = vpack.c.b16 %v1036, %v1036
    %v1057 = vpack.c.b16 %v1037, %v1037
    %1078 = vst [vmem:[#allocation8] sm:$0xf] %v1038
    %1079 = vst [vmem:[#allocation8 + $0x4] sm:$0xf] %v1039
    %1080 = vst [vmem:[#allocation8 + $0x8] sm:$0xf] %v1040
    %1081 = vst [vmem:[#allocation8 + $0xc] sm:$0xf] %v1041
    %1082 = vst [vmem:[#allocation8 + $0x10] sm:$0xf] %v1042
    %1083 = vst [vmem:[#allocation8 + $0x14] sm:$0xf] %v1043
    %1084 = vst [vmem:[#allocation8 + $0x18] sm:$0xf] %v1044
    %1085 = vst [vmem:[#allocation8 + $0x1c] sm:$0xf] %v1045
    %1086 = vst [vmem:[#allocation8 + $0x20] sm:$0xf] %v1046
    %1087 = vst [vmem:[#allocation8 + $0x24] sm:$0xf] %v1047
    %1088 = vst [vmem:[#allocation8 + $0x28] sm:$0xf] %v1048
    %1089 = vst [vmem:[#allocation8 + $0x2c] sm:$0xf] %v1049
    %1090 = vst [vmem:[#allocation8 + $0x30] sm:$0xf] %v1050
    %1091 = vst [vmem:[#allocation8 + $0x34] sm:$0xf] %v1051
    %1092 = vst [vmem:[#allocation8 + $0x38] sm:$0xf] %v1052
    %1093 = vst [vmem:[#allocation8 + $0x3c] sm:$0xf] %v1053
    %1094 = vst [vmem:[#allocation8 + $0x40] sm:$0xf] %v1054
    %1095 = vst [vmem:[#allocation8 + $0x44] sm:$0xf] %v1055
    %1096 = vst [vmem:[#allocation8 + $0x48] sm:$0xf] %v1056
    %1097 = vst [vmem:[#allocation8 + $0x4c] sm:$0xf] %v1057
    // Predicated region
    $region50: #{tpu_custom_call.1} parent=1 // pred_check
      _
    $region51: #{tpu_custom_call.1} parent=1 // pred_check_branch
      %1099 = sbr.rel (0) target = $region53
    $region52: #{tpu_custom_call.1} parent=1 // pred_region
      %s1101 = ssub.s32 1280, 1280
      %1102 = vsyncadd [#allocation4], %s1101
      %s1103 = sshll.u32 [#allocation8], 4
      %s1104 = int_to_ptr.vmem [resolvable:$true] %s1103
      %1109 = dma.vmem_to_hbm [thread:$0]  %s1104, 1280, %s9, [#allocation4], 64, 64, 4
    $region53: #{tpu_custom_call.1} parent=1 // pred_fallthru
      _
    // Predicated region
    $region54: #{tpu_custom_call.1} parent=1 // pred_check
      _
    $region55: #{tpu_custom_call.1} parent=1 // pred_check_branch
      %1111 = sbr.rel (0) target = $region57
    $region56: #{tpu_custom_call.1} parent=1 // pred_region
      %1112 = dma.done [#allocation4], 1280
    $region57: #{tpu_custom_call.1} parent=1 // pred_fallthru
      _
    %1113 = vsyncpa [#allocation3], 1
    %1114 = vsyncpa [#allocation6], 1
    %1115 = vsyncpa [#allocation4], 1

</llo_original>
